<compile_context>
chip_gen: v6e
topology: v6e:2x2x1
jax: 0.10.0
libtpu: 0.0.40
codegen_flags: <defaults>
</compile_context>

<pallas_src>
import functools

import jax
import jax.numpy as jnp
from jax.experimental import pallas as pl
from jax.experimental.pallas import tpu as pltpu

KSIZE = 7            # fused kernel size (largest of 3/5/7)
PAD = KSIZE // 2     # "same" padding
C_IN = 2
C_OUT = 90           # 30 (conv5) + 30 (conv7) + 30 (conv3)
C_PAD = 128          # padded output channels (lane-dense stores, full MXU N)
K_TAPS = KSIZE * KSIZE * C_IN   # 98 = im2col contraction depth


def _fused_conv_kernel(x_ref, w_ref, b_ref, o_ref, *, tile_h, W):
    """One (batch, row-tile) grid step.

    x_ref: (1, tile_h, W+6, 14)   dy-gathered rows, channel = dy*2 + c (bf16)
    w_ref: (98, 128)              im2col weights, row = dx*14 + dy*2 + c (bf16)
    b_ref: (1, 128)               fused bias, zero-padded to 128 (f32)
    o_ref: (1, tile_h*W, 128)     ReLU(conv) output rows (f32)
    """
    xr = x_ref[0]                                    # (tile_h, W+6, 14)

    # im2col over the 7 dx taps -> (tile_h, W, 98); column j = dx*14 + dy*2 + c
    cols = jnp.concatenate(
        [xr[:, dx:dx + W, :] for dx in range(KSIZE)], axis=-1)
    patch = cols.reshape(tile_h * W, K_TAPS)         # (M, 98)

    # Single MXU matmul: (M, 98) x (98, 128), f32 accumulation.
    acc = jnp.dot(patch, w_ref[...], preferred_element_type=jnp.float32)
    acc = acc + b_ref[...]                           # bias broadcast over rows
    o_ref[0] = jnp.maximum(acc, 0.0)                 # lane-dense f32 store


def _choose_tile_h(H, W, max_rows):
    """Largest divisor t of H with (t*W) % 8 == 0 and t*W <= max_rows."""
    cands = [t for t in range(1, H + 1) if H % t == 0 and (t * W) % 8 == 0]
    fit = [t for t in cands if t * W <= max_rows]
    if fit:
        return max(fit)
    return min(cands) if cands else H


def gradient_spa_pallas(x_nchw, w_fused_hwio, b_fused, *, max_rows_per_tile=2048):
    """x_nchw: (N, 2, H, W) float32 -> (N, 90, H, W) float32."""
    N, Cin, H, W = x_nchw.shape
    assert Cin == C_IN

    # ---- layout plumbing in the wrapper (cheap: input is only 2 channels) --
    # NCHW -> NHWC, bf16, spatial "same" padding.
    x_nhwc = jnp.transpose(x_nchw, (0, 2, 3, 1)).astype(jnp.bfloat16)
    x_pad = jnp.pad(x_nhwc, ((0, 0), (PAD, PAD), (PAD, PAD), (0, 0)))
    # dy-gather: x_rows[n, h, w, dy*2 + c] = x_pad[n, h + dy, w, c]
    # -> removes the H halo; only the dx halo (kept whole in W+6) remains.
    x_rows = jnp.concatenate(
        [x_pad[:, dy:dy + H] for dy in range(KSIZE)], axis=-1)   # (N,H,W+6,14)

    # Weights: (dy, dx, c, o) HWIO -> (dx, dy, c, o) -> (98, 90) -> pad to 128.
    w98 = jnp.transpose(w_fused_hwio, (1, 0, 2, 3)).reshape(K_TAPS, C_OUT)
    w98 = jnp.pad(w98, ((0, 0), (0, C_PAD - C_OUT))).astype(jnp.bfloat16)
    b_pad = jnp.pad(b_fused, (0, C_PAD - C_OUT)).reshape(1, C_PAD)
    b_pad = b_pad.astype(jnp.float32)

    Wp = W + 2 * PAD
    tile_h = _choose_tile_h(H, W, max_rows_per_tile)
    n_row_tiles = H // tile_h
    tile_m = tile_h * W

    kernel = functools.partial(_fused_conv_kernel, tile_h=tile_h, W=W)

    out_flat = pl.pallas_call(
        kernel,
        out_shape=jax.ShapeDtypeStruct((N, H * W, C_PAD), jnp.float32),
        grid_spec=pltpu.PrefetchScalarGridSpec(
            num_scalar_prefetch=0,
            grid=(N, n_row_tiles),
            in_specs=[
                # dy-gathered input rows for this (batch, row-tile).
                pl.BlockSpec((1, tile_h, Wp, KSIZE * C_IN),
                             lambda n, r: (n, r, 0, 0)),
                # im2col weights: constant block -> stays resident in VMEM.
                pl.BlockSpec((K_TAPS, C_PAD), lambda n, r: (0, 0)),
                pl.BlockSpec((1, C_PAD), lambda n, r: (0, 0)),
            ],
            out_specs=pl.BlockSpec((1, tile_m, C_PAD),
                                   lambda n, r: (n, r, 0)),
        ),
        compiler_params=pltpu.CompilerParams(
            dimension_semantics=("parallel", "parallel")),
    )(x_rows, w98, b_pad)

    # (N, H*W, 128) -> drop channel padding -> NCHW to match PyTorch output.
    out = out_flat[:, :, :C_OUT].reshape(N, H, W, C_OUT)
    return jnp.transpose(out, (0, 3, 1, 2))


def _make_params(key):
    """Deterministic synthetic parameters matching nn.Conv2d shapes."""
    ks = jax.random.split(key, 6)

    def conv_params(kw, kb, k):
        fan_in = C_IN * k * k
        bound = 1.0 / jnp.sqrt(fan_in)
        w = jax.random.uniform(kw, (30, C_IN, k, k), jnp.float32,
                               -bound, bound)          # OIHW (PyTorch layout)
        b = jax.random.uniform(kb, (30,), jnp.float32, -bound, bound)
        return w, b

    w3, b3 = conv_params(ks[0], ks[1], 3)
    w5, b5 = conv_params(ks[2], ks[3], 5)
    w7, b7 = conv_params(ks[4], ks[5], 7)

    def to_hwio_padded(w_oihw, k):
        # OIHW -> HWIO, zero-pad spatial dims to 7x7 (centered).
        w_hwio = jnp.transpose(w_oihw, (2, 3, 1, 0))   # (k, k, Cin, 30)
        p = (KSIZE - k) // 2
        return jnp.pad(w_hwio, ((p, p), (p, p), (0, 0), (0, 0)))

    # Channel order matches torch.cat((feat_5, feat_7, feat_3), dim=1).
    w_fused = jnp.concatenate(
        [to_hwio_padded(w5, 5), to_hwio_padded(w7, 7), to_hwio_padded(w3, 3)],
        axis=-1)                                       # (7, 7, 2, 90)
    b_fused = jnp.concatenate([b5, b7, b3], axis=0)    # (90,)
    return (w3, b3, w5, b5, w7, b7), w_fused, b_fused


def _reference(x_nchw, raw_params):
    """Pure-JAX f32 reference reproducing the PyTorch forward (NCHW)."""
    w3, b3, w5, b5, w7, b7 = raw_params

    def conv(x, w, b, pad):
        y = jax.lax.conv_general_dilated(
            x, w, window_strides=(1, 1), padding=[(pad, pad), (pad, pad)],
            dimension_numbers=("NCHW", "OIHW", "NCHW"))
        return y + b[None, :, None, None]

    f3 = conv(x_nchw, w3, b3, 1)
    f5 = conv(x_nchw, w5, b5, 2)
    f7 = conv(x_nchw, w7, b7, 3)
    return jax.nn.relu(jnp.concatenate([f5, f7, f3], axis=1))


if __name__ == "__main__":
    key = jax.random.PRNGKey(0)
    k_param, k_x1, k_x2 = jax.random.split(key, 3)

    raw_params, w_fused, b_fused = _make_params(k_param)

    # bf16 inputs / f32 accumulation -> compare against the f32 reference
    # with a bf16-appropriate tolerance.
    TOL = 2e-2

    # Case 1: forces multiple row tiles per image (exercises the spatial grid).
    N, H, W = 2, 32, 32
    x1 = jax.random.normal(k_x1, (N, C_IN, H, W), jnp.float32)
    out1 = jax.block_until_ready(
        gradient_spa_pallas(x1, w_fused, b_fused, max_rows_per_tile=256))
    ref1 = jax.block_until_ready(_reference(x1, raw_params))
    assert out1.shape == (N, C_OUT, H, W)
    assert jnp.allclose(out1, ref1, atol=TOL, rtol=TOL), (
        float(jnp.max(jnp.abs(out1 - ref1))))

    # Case 2: default tile size (single row tile per image).
    N, H, W = 2, 16, 16
    x2 = jax.random.normal(k_x2, (N, C_IN, H, W), jnp.float32)
    out2 = jax.block_until_ready(gradient_spa_pallas(x2, w_fused, b_fused))
    ref2 = jax.block_until_ready(_reference(x2, raw_params))
    assert out2.shape == (N, C_OUT, H, W)
    assert jnp.allclose(out2, ref2, atol=TOL, rtol=TOL), (
        float(jnp.max(jnp.abs(out2 - ref2))))

    print("KERNEL_OK")
</pallas_src>

<mosaic_0001>
module attributes {stable_mosaic.version = 11 : i64} {
  func.func @_fused_conv_kernel(%arg0: i32, %arg1: i32, %arg2: memref<1x8x38x14xbf16, #tpu.memory_space<vmem>>, %arg3: memref<98x128xbf16, #tpu.memory_space<vmem>>, %arg4: memref<1x128xf32, #tpu.memory_space<vmem>>, %arg5: memref<1x256x128xf32, #tpu.memory_space<vmem>>) attributes {dimension_semantics = [#tpu.dimension_semantics<parallel>, #tpu.dimension_semantics<parallel>], iteration_bounds = array<i64: 2, 4>, scalar_prefetch = 0 : i64, scratch_operands = 0 : i64, tpu.core_type = #tpu.core_type<tc>, window_params = [{transform_indices = @transform_0, window_bounds = array<i64: 1, 8, 38, 14>}, {pipeline_mode = #tpu.pipeline_mode<synchronous>, transform_indices = @transform_1, window_bounds = array<i64: 98, 128>}, {pipeline_mode = #tpu.pipeline_mode<synchronous>, transform_indices = @transform_2, window_bounds = array<i64: 1, 128>}, {transform_indices = @transform_3, window_bounds = array<i64: 1, 256, 128>}]} {
    %c0 = arith.constant 0 : index
    %c0_0 = arith.constant 0 : index
    %c0_1 = arith.constant 0 : index
    %c0_2 = arith.constant 0 : index
    %0 = vector.load %arg2[%c0, %c0_0, %c0_1, %c0_2] : memref<1x8x38x14xbf16, #tpu.memory_space<vmem>>, vector<1x8x38x14xbf16>
    %1 = vector.shape_cast %0 : vector<1x8x38x14xbf16> to vector<8x38x14xbf16>
    %2 = vector.extract_strided_slice %1 {offsets = [0, 0, 0], sizes = [8, 32, 14], strides = [1, 1, 1]} : vector<8x38x14xbf16> to vector<8x32x14xbf16>
    %3 = vector.extract_strided_slice %1 {offsets = [0, 1, 0], sizes = [8, 32, 14], strides = [1, 1, 1]} : vector<8x38x14xbf16> to vector<8x32x14xbf16>
    %4 = vector.extract_strided_slice %1 {offsets = [0, 2, 0], sizes = [8, 32, 14], strides = [1, 1, 1]} : vector<8x38x14xbf16> to vector<8x32x14xbf16>
    %5 = vector.extract_strided_slice %1 {offsets = [0, 3, 0], sizes = [8, 32, 14], strides = [1, 1, 1]} : vector<8x38x14xbf16> to vector<8x32x14xbf16>
    %6 = vector.extract_strided_slice %1 {offsets = [0, 4, 0], sizes = [8, 32, 14], strides = [1, 1, 1]} : vector<8x38x14xbf16> to vector<8x32x14xbf16>
    %7 = vector.extract_strided_slice %1 {offsets = [0, 5, 0], sizes = [8, 32, 14], strides = [1, 1, 1]} : vector<8x38x14xbf16> to vector<8x32x14xbf16>
    %8 = vector.extract_strided_slice %1 {offsets = [0, 6, 0], sizes = [8, 32, 14], strides = [1, 1, 1]} : vector<8x38x14xbf16> to vector<8x32x14xbf16>
    %9 = tpu.concatenate %2, %3, %4, %5, %6, %7, %8 in 2 : vector<8x32x14xbf16>, vector<8x32x14xbf16>, vector<8x32x14xbf16>, vector<8x32x14xbf16>, vector<8x32x14xbf16>, vector<8x32x14xbf16>, vector<8x32x14xbf16> -> vector<8x32x98xbf16>
    %10 = vector.shape_cast %9 : vector<8x32x98xbf16> to vector<256x98xbf16>
    %c0_3 = arith.constant 0 : index
    %c0_4 = arith.constant 0 : index
    %11 = vector.load %arg3[%c0_3, %c0_4] : memref<98x128xbf16, #tpu.memory_space<vmem>>, vector<98x128xbf16>
    %cst = arith.constant dense<0.000000e+00> : vector<256x128xf32>
    %12 = tpu.matmul %10, %11, %cst {dimension_numbers = #tpu.dot_dimension_numbers<[1], [0], [0], [1], [0, 0, 1, 1], [], []>} : vector<256x98xbf16>, vector<98x128xbf16>, vector<256x128xf32> -> vector<256x128xf32>
    %c0_5 = arith.constant 0 : index
    %c0_6 = arith.constant 0 : index
    %13 = vector.load %arg4[%c0_5, %c0_6] : memref<1x128xf32, #tpu.memory_space<vmem>>, vector<1x128xf32>
    %14 = vector.broadcast %13 : vector<1x128xf32> to vector<256x128xf32>
    %15 = arith.addf %12, %14 : vector<256x128xf32>
    %cst_7 = arith.constant 0.000000e+00 : f32
    %16 = vector.broadcast %cst_7 : f32 to vector<256x128xf32>
    %17 = arith.maximumf %15, %16 : vector<256x128xf32>
    %c0_8 = arith.constant 0 : index
    %c0_9 = arith.constant 0 : index
    %c0_10 = arith.constant 0 : index
    %18 = vector.load %arg5[%c0_8, %c0_9, %c0_10] : memref<1x256x128xf32, #tpu.memory_space<vmem>>, vector<1x256x128xf32>
    %19 = vector.shape_cast %18 : vector<1x256x128xf32> to vector<256x128xf32>
    %20 = vector.shape_cast %17 : vector<256x128xf32> to vector<1x256x128xf32>
    tpu.vector_store %arg5[%c0_8, %c0_9, %c0_10], %20 {strides = array<i32>} : memref<1x256x128xf32, #tpu.memory_space<vmem>>, vector<1x256x128xf32>,
    return
  }
  func.func @transform_0(%arg0: i32, %arg1: i32) -> (i32, i32, i32, i32) {
    %c0_i32 = arith.constant 0 : i32
    %c0_i32_0 = arith.constant 0 : i32
    %c0_i32_1 = arith.constant 0 : i32
    return %arg0, %arg1, %c0_i32, %c0_i32_0 : i32, i32, i32, i32
  }
  func.func @transform_1(%arg0: i32, %arg1: i32) -> (i32, i32) {
    %c0_i32 = arith.constant 0 : i32
    %c0_i32_0 = arith.constant 0 : i32
    %c0_i32_1 = arith.constant 0 : i32
    return %c0_i32, %c0_i32_0 : i32, i32
  }
  func.func @transform_2(%arg0: i32, %arg1: i32) -> (i32, i32) {
    %c0_i32 = arith.constant 0 : i32
    %c0_i32_0 = arith.constant 0 : i32
    %c0_i32_1 = arith.constant 0 : i32
    return %c0_i32, %c0_i32_0 : i32, i32
  }
  func.func @transform_3(%arg0: i32, %arg1: i32) -> (i32, i32, i32) {
    %c0_i32 = arith.constant 0 : i32
    %c0_i32_0 = arith.constant 0 : i32
    return %arg0, %arg1, %c0_i32 : i32, i32, i32
  }
}

</mosaic_0001>

<llo_original>
// kernel: tpu_custom_call.1
$region0: #{tpu_custom_call.1}
  #allocation0 [shape = 'u32[]', space=smem, size = 0x4, offset = 0x4, fixed_abs, tag = 'smem constant byte address 0x4 - core index']
  #allocation1 [shape = 'u32[144,128]{1,0:T(1,128)}', space=vmem, size = 0x12000, scoped, tag = 'internal scratch']
  %s0 = inlined_call_operand.vmem [shape: bf16[2,32,38,14], index: 0, kind: input, shape index: {}]
  %s1 = inlined_call_operand.vmem [shape: bf16[98,128], index: 1, kind: input, shape index: {}]
  %s2 = inlined_call_operand.vmem [shape: f32[1,128], index: 2, kind: input, shape index: {}]
  %s3 = inlined_call_operand.hbm [shape: f32[2,1024,128], index: 3, kind: output, shape index: {}]
  %s4 = sld [smem:[#allocation0]]
  $region45: #{tpu_custom_call.1} parent=0
    _
  %s6 = ssub.s32 1, %s4
  %s7 = scalar_select 0, %s6, %s4
  $region1: #{tpu_custom_call.1} parent=0
    #allocation2 [shape = 'u8[262144]{0}', space=vmem, size = 0x40000, scoped, tag = 'output window, operand 0']
    #allocation3 [shape = 's32[2]{0}', space=sflag, size = 0x8, scoped, tag = 'scoped memory for tpu_custom_call.1']
    %8 = vsyncpa [#allocation3], 0
    %s9 = scalar_lea.sflag [#allocation3], 1
    %10 = vsyncpa %s9, 0
    loop: start=0, step=1, limit=10
    $region2: #{tpu_custom_call.1} parent=1 // loop_pre_header
      _
    $region3: #{tpu_custom_call.1} parent=1 // loop_header
      %s12 = sphi 0, %s16
      %p13 = scmp.ge.s32.totalorder %s12, 10
      %s19 = sphi 0, %s31
      %s20 = sphi 0, %s27
      %s21 = sphi 0, %s19
      %s22 = sphi 0, %s20
      %s23 = sphi 0, %s21
      %s24 = sphi 0, %s22
      %s36 = sphi 0, %s38
      %s39 = sphi 0, %s36
      %s40 = sphi 0, %s39
      %s56 = sphi 0, %s40
      %s60 = sphi 0, %s60
      %s62 = sphi 0, %s60
      %s63 = sphi 0, %s62
      %s77 = sphi 0, %s63
      %s81 = sphi 0, %s81
      %s83 = sphi 0, %s81
      %s84 = sphi 0, %s83
      %s98 = sphi 0, %s84
      %s106 = sphi 0, %s108
      %s109 = sphi 0, %s106
      %s110 = sphi 0, %s109
      %s126 = sphi 0, %s110
    $region4: #{tpu_custom_call.1} parent=1 // loop_header_branch
      %15 = sbr.rel (%p13) target = $region8
    $region5: #{tpu_custom_call.1} parent=1 // loop_body
      %s17 = ssub.s32 %s12, 1
      %s18 = ssub.s32 %s12, 2
      %s25 = sadd.s32 1, %s20
      %p26 = scmp.ge.s32.totalorder %s25, 4
      %s27 = scalar_select %p26, 0, %s25
      %s28 = sadd.s32 1, %s19
      %s29 = scalar_select %p26, %s28, %s19
      %p30 = scmp.ge.s32.totalorder %s29, 2
      %s31 = scalar_select %p30, 0, %s29
      %s32 = ssub.s32 %s19, %s31
      %s33 = ssub.s32 %s20, %s27
      %s34 = sor.u32 %s32, %s33
      %p35 = scmp.eq.s32.totalorder %s34, 0
      %s37 = sadd.s32 %s36, 1
      %s38 = scalar_select %p35, %s36, %s37
      %p41 = pneg %p35
      %p42 = scmp.eq.s32.totalorder %s12, 7
      %p43 = por %p41, %p42
      %p44 = scmp.ne.s32.totalorder %s36, %s39
      %p45 = scmp.eq.s32.totalorder %s12, 0
      %p46 = por %p44, %p45
      %p47 = scmp.ne.s32.totalorder %s36, %s39
      %p48 = scmp.eq.s32.totalorder %s17, 7
      %p49 = por %p47, %p48
      %p50 = scmp.ne.s32.totalorder %s39, %s40
      %p51 = scmp.eq.s32.totalorder %s17, 0
      %p52 = por %p50, %p51
      %p53 = scmp.ne.s32.totalorder %s39, %s40
      %p54 = scmp.eq.s32.totalorder %s18, 7
      %p55 = por %p53, %p54
      %p57 = scmp.ne.s32.totalorder %s40, %s56
      %p58 = scmp.eq.s32.totalorder %s18, 0
      %p59 = por %p57, %p58
      %s61 = sadd.s32 %s60, 1
      %p64 = scmp.eq.s32.totalorder %s12, 7
      %p65 = scmp.ne.s32.totalorder %s60, %s62
      %p66 = scmp.eq.s32.totalorder %s12, 0
      %p67 = por %p65, %p66
      %p68 = scmp.ne.s32.totalorder %s60, %s62
      %p69 = scmp.eq.s32.totalorder %s17, 7
      %p70 = por %p68, %p69
      %p71 = scmp.ne.s32.totalorder %s62, %s63
      %p72 = scmp.eq.s32.totalorder %s17, 0
      %p73 = por %p71, %p72
      %p74 = scmp.ne.s32.totalorder %s62, %s63
      %p75 = scmp.eq.s32.totalorder %s18, 7
      %p76 = por %p74, %p75
      %p78 = scmp.ne.s32.totalorder %s63, %s77
      %p79 = scmp.eq.s32.totalorder %s18, 0
      %p80 = por %p78, %p79
      %s82 = sadd.s32 %s81, 1
      %p85 = scmp.eq.s32.totalorder %s12, 7
      %p86 = scmp.ne.s32.totalorder %s81, %s83
      %p87 = scmp.eq.s32.totalorder %s12, 0
      %p88 = por %p86, %p87
      %p89 = scmp.ne.s32.totalorder %s81, %s83
      %p90 = scmp.eq.s32.totalorder %s17, 7
      %p91 = por %p89, %p90
      %p92 = scmp.ne.s32.totalorder %s83, %s84
      %p93 = scmp.eq.s32.totalorder %s17, 0
      %p94 = por %p92, %p93
      %p95 = scmp.ne.s32.totalorder %s83, %s84
      %p96 = scmp.eq.s32.totalorder %s18, 7
      %p97 = por %p95, %p96
      %p99 = scmp.ne.s32.totalorder %s84, %s98
      %p100 = scmp.eq.s32.totalorder %s18, 0
      %p101 = por %p99, %p100
      %s102 = ssub.s32 %s19, %s31
      %s103 = ssub.s32 %s20, %s27
      %s104 = sor.u32 %s102, %s103
      %p105 = scmp.eq.s32.totalorder %s104, 0
      %s107 = sadd.s32 %s106, 1
      %s108 = scalar_select %p105, %s106, %s107
      %p111 = pneg %p105
      %p112 = scmp.eq.s32.totalorder %s12, 7
      %p113 = por %p111, %p112
      %p114 = scmp.ne.s32.totalorder %s106, %s109
      %p115 = scmp.eq.s32.totalorder %s12, 0
      %p116 = por %p114, %p115
      %p117 = scmp.ne.s32.totalorder %s106, %s109
      %p118 = scmp.eq.s32.totalorder %s17, 7
      %p119 = por %p117, %p118
      %p120 = scmp.ne.s32.totalorder %s109, %s110
      %p121 = scmp.eq.s32.totalorder %s17, 0
      %p122 = por %p120, %p121
      %p123 = scmp.ne.s32.totalorder %s109, %s110
      %p124 = scmp.eq.s32.totalorder %s18, 7
      %p125 = por %p123, %p124
      %p127 = scmp.ne.s32.totalorder %s110, %s126
      %p128 = scmp.eq.s32.totalorder %s18, 0
      %p129 = por %p127, %p128
      %p130 = scmp.le.s32.totalorder 1, %s12
      %p131 = scmp.lt.s32.totalorder %s12, 9
      %p132 = pnand %p130, %p131
      %p133 = pneg %p132
      // Predicated region
      $region9: #{tpu_custom_call.1} parent=5 // pred_check
        _
      $region10: #{tpu_custom_call.1} parent=5 // pred_check_branch
        %135 = sbr.rel (%p132) target = $region12
      $region11: #{tpu_custom_call.1} parent=5 // pred_region
        %s136 = ssub.s32 %s12, 1
        // Predicated region
        $region13: #{tpu_custom_call.1} parent=11 // pred_check
          %p137 = pneg %p73
        $region14: #{tpu_custom_call.1} parent=11 // pred_check_branch
          %139 = sbr.rel (%p137) target = $region16
        $region15: #{tpu_custom_call.1} parent=11 // pred_region
          _
        $region16: #{tpu_custom_call.1} parent=11 // pred_fallthru
          _
        // Predicated region
        $region17: #{tpu_custom_call.1} parent=11 // pred_check
          %p140 = pneg %p94
        $region18: #{tpu_custom_call.1} parent=11 // pred_check_branch
          %142 = sbr.rel (%p140) target = $region20
        $region19: #{tpu_custom_call.1} parent=11 // pred_region
          _
        $region20: #{tpu_custom_call.1} parent=11 // pred_fallthru
          _
      $region12: #{tpu_custom_call.1} parent=5 // pred_fallthru
        _
      %p143 = scmp.lt.s32.totalorder %s12, 8
      // Predicated region
      $region21: #{tpu_custom_call.1} parent=5 // pred_check
        %p144 = pneg %p143
      $region22: #{tpu_custom_call.1} parent=5 // pred_check_branch
        %146 = sbr.rel (%p144) target = $region24
      $region23: #{tpu_custom_call.1} parent=5 // pred_region
        // Predicated region
        $region25: #{tpu_custom_call.1} parent=23 // pred_check
          %p147 = pneg %p46
        $region26: #{tpu_custom_call.1} parent=23 // pred_check_branch
          %149 = sbr.rel (%p147) target = $region28
        $region27: #{tpu_custom_call.1} parent=23 // pred_region
          %s150 = smul.u32 8, %s20
          %p151 = scmp.lt.s32.totalorder %s19, 1
          %s152 = scalar_select %p151, %s19, 1
          %p153 = scmp.lt.s32.totalorder %s150, 31
          %s154 = scalar_select %p153, %s150, 31
          %s155 = smul.addr %s154, 5
          %s156 = smul.addr %s152, 160
          %s157 = sadd.s32 %s155, %s156
          %s158 = smul.addr %s157, 4
          %s159 = scalar_lea.vmem %s0, %s158
          %s160 = smul.u32 8, %s20
        $region28: #{tpu_custom_call.1} parent=23 // pred_fallthru
          _
      $region24: #{tpu_custom_call.1} parent=5 // pred_fallthru
        _
      %p161 = scmp.le.s32.totalorder 1, %s12
      %p162 = scmp.lt.s32.totalorder %s12, 9
      %p163 = pnand %p161, %p162
      %p164 = pneg %p163
      // Predicated region
      $region29: #{tpu_custom_call.1} parent=5 // pred_check
        _
      $region30: #{tpu_custom_call.1} parent=5 // pred_check_branch
        %166 = sbr.rel (%p163) target = $region32
      $region31: #{tpu_custom_call.1} parent=5 // pred_region
        %s167 = ssub.s32 %s12, 1
        %s168 = smul.u32 8, %s22
        %p169 = scmp.lt.s32.totalorder %s21, 1
        %s170 = scalar_select %p169, %s21, 1
        %p171 = scmp.lt.s32.totalorder %s168, 31
        %s172 = scalar_select %p171, %s168, 31
        %s173 = smul.addr %s172, 5
        %s174 = smul.addr %s170, 160
        %s175 = sadd.s32 %s173, %s174
        %s176 = smul.addr %s175, 4
        %s177 = scalar_lea.vmem %s0, %s176
        %p178 = pneg %p52
        %p179 = pneg %p49
        %p180 = pneg %p73
        %p181 = pneg %p70
        %p182 = pneg %p94
        %p183 = pneg %p91
        %p184 = pneg %p122
        %p185 = pneg %p119
        %s186 = sand.u32 %s109, 1
        %s187 = scalar_lea.sflag [#allocation3], %s186
        %s188 = sand.u32 %s109, 1
        %s189 = smul.addr %s188, 256
        %s190 = scalar_lea.vmem [#allocation2], %s189
        %s191 = smul.u32 8, %s22
        %p192 = scmp.lt.s32.totalorder %s21, 1
        %s193 = scalar_select %p192, %s21, 1
        %p194 = scmp.lt.s32.totalorder %s191, 31
        %s195 = scalar_select %p194, %s191, 31
        %s196 = smul.addr %s195, 5
        %s197 = smul.addr %s193, 160
        %s198 = sadd.s32 %s196, %s197
        %s199 = smul.addr %s198, 4
        %s200 = scalar_lea.vmem %s0, %s199
        %s201 = smul.u32 8, %s22
        %s202 = smul.u32 32, %s22
        %v204 = vld [vmem:[%s200] sm:$0xf]
        %v205 = vld [vmem:[%s200 + $0x4] sm:$0xf]
        %v206 = vld [vmem:[%s200 + $0x8] sm:$0xf]
        %v207 = vld [vmem:[%s200 + $0xc] sm:$0xf]
        %v208 = vld [vmem:[%s200 + $0x10] sm:$0x7]
        %v209 = vld [vmem:[%s200 + $0x14] sm:$0xf]
        %v210 = vld [vmem:[%s200 + $0x18] sm:$0xf]
        %v211 = vld [vmem:[%s200 + $0x1c] sm:$0xf]
        %v212 = vld [vmem:[%s200 + $0x20] sm:$0xf]
        %v213 = vld [vmem:[%s200 + $0x24] sm:$0x7]
        %v214 = vld [vmem:[%s200 + $0x28] sm:$0xf]
        %v215 = vld [vmem:[%s200 + $0x2c] sm:$0xf]
        %v216 = vld [vmem:[%s200 + $0x30] sm:$0xf]
        %v217 = vld [vmem:[%s200 + $0x34] sm:$0xf]
        %v218 = vld [vmem:[%s200 + $0x38] sm:$0x7]
        %v219 = vld [vmem:[%s200 + $0x3c] sm:$0xf]
        %v220 = vld [vmem:[%s200 + $0x40] sm:$0xf]
        %v221 = vld [vmem:[%s200 + $0x44] sm:$0xf]
        %v222 = vld [vmem:[%s200 + $0x48] sm:$0xf]
        %v223 = vld [vmem:[%s200 + $0x4c] sm:$0x7]
        %v224 = vld [vmem:[%s200 + $0x50] sm:$0xf]
        %v225 = vld [vmem:[%s200 + $0x54] sm:$0xf]
        %v226 = vld [vmem:[%s200 + $0x58] sm:$0xf]
        %v227 = vld [vmem:[%s200 + $0x5c] sm:$0xf]
        %v228 = vld [vmem:[%s200 + $0x60] sm:$0x7]
        %v229 = vld [vmem:[%s200 + $0x64] sm:$0xf]
        %v230 = vld [vmem:[%s200 + $0x68] sm:$0xf]
        %v231 = vld [vmem:[%s200 + $0x6c] sm:$0xf]
        %v232 = vld [vmem:[%s200 + $0x70] sm:$0xf]
        %v233 = vld [vmem:[%s200 + $0x74] sm:$0x7]
        %v234 = vld [vmem:[%s200 + $0x78] sm:$0xf]
        %v235 = vld [vmem:[%s200 + $0x7c] sm:$0xf]
        %v236 = vld [vmem:[%s200 + $0x80] sm:$0xf]
        %v237 = vld [vmem:[%s200 + $0x84] sm:$0xf]
        %v238 = vld [vmem:[%s200 + $0x88] sm:$0x7]
        %v239 = vld [vmem:[%s200 + $0x8c] sm:$0xf]
        %v240 = vld [vmem:[%s200 + $0x90] sm:$0xf]
        %v241 = vld [vmem:[%s200 + $0x94] sm:$0xf]
        %v242 = vld [vmem:[%s200 + $0x98] sm:$0xf]
        %v243 = vld [vmem:[%s200 + $0x9c] sm:$0x7]
        %v276 = vunpack.c.l.b16 %v204
        %v277 = vunpack.c.l.b16 %v205
        %v278 = vunpack.c.l.b16 %v206
        %v279 = vunpack.c.l.b16 %v207
        %v280 = vunpack.c.l.b16 %v209
        %v281 = vunpack.c.l.b16 %v210
        %v282 = vunpack.c.l.b16 %v211
        %v283 = vunpack.c.l.b16 %v212
        %v284 = vunpack.c.l.b16 %v214
        %v285 = vunpack.c.l.b16 %v215
        %v286 = vunpack.c.l.b16 %v216
        %v287 = vunpack.c.l.b16 %v217
        %v288 = vunpack.c.l.b16 %v219
        %v289 = vunpack.c.l.b16 %v220
        %v290 = vunpack.c.l.b16 %v221
        %v291 = vunpack.c.l.b16 %v222
        %v292 = vunpack.c.l.b16 %v224
        %v293 = vunpack.c.l.b16 %v225
        %v294 = vunpack.c.l.b16 %v226
        %v295 = vunpack.c.l.b16 %v227
        %v296 = vunpack.c.l.b16 %v229
        %v297 = vunpack.c.l.b16 %v230
        %v298 = vunpack.c.l.b16 %v231
        %v299 = vunpack.c.l.b16 %v232
        %v300 = vunpack.c.l.b16 %v234
        %v301 = vunpack.c.l.b16 %v235
        %v302 = vunpack.c.l.b16 %v236
        %v303 = vunpack.c.l.b16 %v237
        %v304 = vunpack.c.l.b16 %v239
        %v305 = vunpack.c.l.b16 %v240
        %v306 = vunpack.c.l.b16 %v241
        %v307 = vunpack.c.l.b16 %v242
        %v308 = vpack.c.b16 %v277, %v276
        %v309 = vpack.c.b16 %v279, %v278
        %v310 = vpack.c.b16 %v281, %v280
        %v311 = vpack.c.b16 %v283, %v282
        %v312 = vpack.c.b16 %v285, %v284
        %v313 = vpack.c.b16 %v287, %v286
        %v314 = vpack.c.b16 %v289, %v288
        %v315 = vpack.c.b16 %v291, %v290
        %v316 = vpack.c.b16 %v293, %v292
        %v317 = vpack.c.b16 %v295, %v294
        %v318 = vpack.c.b16 %v297, %v296
        %v319 = vpack.c.b16 %v299, %v298
        %v320 = vpack.c.b16 %v301, %v300
        %v321 = vpack.c.b16 %v303, %v302
        %v322 = vpack.c.b16 %v305, %v304
        %v323 = vpack.c.b16 %v307, %v306
        %v332 = vunpack.c.l.b16 %v208
        %v333 = vunpack.c.l.b16 %v213
        %v334 = vunpack.c.l.b16 %v218
        %v335 = vunpack.c.l.b16 %v223
        %v336 = vunpack.c.l.b16 %v228
        %v337 = vunpack.c.l.b16 %v233
        %v338 = vunpack.c.l.b16 %v238
        %v339 = vunpack.c.l.b16 %v243
        %v340 = vpack.c.b16 %v332, %v332
        %v341 = vpack.c.b16 %v333, %v333
        %v342 = vpack.c.b16 %v334, %v334
        %v343 = vpack.c.b16 %v335, %v335
        %v344 = vpack.c.b16 %v336, %v336
        %v345 = vpack.c.b16 %v337, %v337
        %v346 = vpack.c.b16 %v338, %v338
        %v347 = vpack.c.b16 %v339, %v339
        %vm348 = vsmask.f32 7424
        %v350 = vshrl.u32 %v308, 16
        %v352 = vshll.u32 %v308, 16
        %v354 = vrot.slane %v352, 1
        %v355 = vor.u32 %v350, %v354
        %v357 = vshll.u32 %v309, 16
        %v359 = vrot.slane %v357, 1
        %v360 = vsel %vm348, %v355, %v359
        %v361 = vshrl.u32 %v309, 16
        %v363 = vor.u32 %v361, %v359
        %v365 = vshll.u32 %v340, 16
        %v367 = vrot.slane %v365, 1
        %v368 = vsel %vm348, %v363, %v367
        %v370 = vshrl.u32 %v310, 16
        %v372 = vshll.u32 %v310, 16
        %v374 = vrot.slane %v372, 1
        %v375 = vor.u32 %v370, %v374
        %v377 = vshll.u32 %v311, 16
        %v379 = vrot.slane %v377, 1
        %v380 = vsel %vm348, %v375, %v379
        %v381 = vshrl.u32 %v311, 16
        %v383 = vor.u32 %v381, %v379
        %v385 = vshll.u32 %v341, 16
        %v387 = vrot.slane %v385, 1
        %v388 = vsel %vm348, %v383, %v387
        %v390 = vshrl.u32 %v312, 16
        %v392 = vshll.u32 %v312, 16
        %v394 = vrot.slane %v392, 1
        %v395 = vor.u32 %v390, %v394
        %v397 = vshll.u32 %v313, 16
        %v399 = vrot.slane %v397, 1
        %v400 = vsel %vm348, %v395, %v399
        %v401 = vshrl.u32 %v313, 16
        %v403 = vor.u32 %v401, %v399
        %v405 = vshll.u32 %v342, 16
        %v407 = vrot.slane %v405, 1
        %v408 = vsel %vm348, %v403, %v407
        %v410 = vshrl.u32 %v314, 16
        %v412 = vshll.u32 %v314, 16
        %v414 = vrot.slane %v412, 1
        %v415 = vor.u32 %v410, %v414
        %v417 = vshll.u32 %v315, 16
        %v419 = vrot.slane %v417, 1
        %v420 = vsel %vm348, %v415, %v419
        %v421 = vshrl.u32 %v315, 16
        %v423 = vor.u32 %v421, %v419
        %v425 = vshll.u32 %v343, 16
        %v427 = vrot.slane %v425, 1
        %v428 = vsel %vm348, %v423, %v427
        %v430 = vshrl.u32 %v316, 16
        %v432 = vshll.u32 %v316, 16
        %v434 = vrot.slane %v432, 1
        %v435 = vor.u32 %v430, %v434
        %v437 = vshll.u32 %v317, 16
        %v439 = vrot.slane %v437, 1
        %v440 = vsel %vm348, %v435, %v439
        %v441 = vshrl.u32 %v317, 16
        %v443 = vor.u32 %v441, %v439
        %v445 = vshll.u32 %v344, 16
        %v447 = vrot.slane %v445, 1
        %v448 = vsel %vm348, %v443, %v447
        %v450 = vshrl.u32 %v318, 16
        %v452 = vshll.u32 %v318, 16
        %v454 = vrot.slane %v452, 1
        %v455 = vor.u32 %v450, %v454
        %v457 = vshll.u32 %v319, 16
        %v459 = vrot.slane %v457, 1
        %v460 = vsel %vm348, %v455, %v459
        %v461 = vshrl.u32 %v319, 16
        %v463 = vor.u32 %v461, %v459
        %v465 = vshll.u32 %v345, 16
        %v467 = vrot.slane %v465, 1
        %v468 = vsel %vm348, %v463, %v467
        %v470 = vshrl.u32 %v320, 16
        %v472 = vshll.u32 %v320, 16
        %v474 = vrot.slane %v472, 1
        %v475 = vor.u32 %v470, %v474
        %v477 = vshll.u32 %v321, 16
        %v479 = vrot.slane %v477, 1
        %v480 = vsel %vm348, %v475, %v479
        %v481 = vshrl.u32 %v321, 16
        %v483 = vor.u32 %v481, %v479
        %v485 = vshll.u32 %v346, 16
        %v487 = vrot.slane %v485, 1
        %v488 = vsel %vm348, %v483, %v487
        %v490 = vshrl.u32 %v322, 16
        %v492 = vshll.u32 %v322, 16
        %v494 = vrot.slane %v492, 1
        %v495 = vor.u32 %v490, %v494
        %v497 = vshll.u32 %v323, 16
        %v499 = vrot.slane %v497, 1
        %v500 = vsel %vm348, %v495, %v499
        %v501 = vshrl.u32 %v323, 16
        %v503 = vor.u32 %v501, %v499
        %v505 = vshll.u32 %v347, 16
        %v507 = vrot.slane %v505, 1
        %v508 = vsel %vm348, %v503, %v507
        %509 = vrot.lane.b32.xlu0 %v360, 14
        %v510 = vpop.permute.xlu0 %509
        %511 = vrot.lane.b32.xlu0 %v368, 14
        %v512 = vpop.permute.xlu0 %511
        %513 = vrot.lane.b32.xlu0 %v380, 14
        %v514 = vpop.permute.xlu0 %513
        %515 = vrot.lane.b32.xlu0 %v388, 14
        %v516 = vpop.permute.xlu0 %515
        %517 = vrot.lane.b32.xlu0 %v400, 14
        %v518 = vpop.permute.xlu0 %517
        %519 = vrot.lane.b32.xlu0 %v408, 14
        %v520 = vpop.permute.xlu0 %519
        %521 = vrot.lane.b32.xlu0 %v420, 14
        %v522 = vpop.permute.xlu0 %521
        %523 = vrot.lane.b32.xlu0 %v428, 14
        %v524 = vpop.permute.xlu0 %523
        %525 = vrot.lane.b32.xlu0 %v440, 14
        %v526 = vpop.permute.xlu0 %525
        %527 = vrot.lane.b32.xlu0 %v448, 14
        %v528 = vpop.permute.xlu0 %527
        %529 = vrot.lane.b32.xlu0 %v460, 14
        %v530 = vpop.permute.xlu0 %529
        %531 = vrot.lane.b32.xlu0 %v468, 14
        %v532 = vpop.permute.xlu0 %531
        %533 = vrot.lane.b32.xlu0 %v480, 14
        %v534 = vpop.permute.xlu0 %533
        %535 = vrot.lane.b32.xlu0 %v488, 14
        %v536 = vpop.permute.xlu0 %535
        %537 = vrot.lane.b32.xlu0 %v500, 14
        %v538 = vpop.permute.xlu0 %537
        %539 = vrot.lane.b32.xlu0 %v508, 14
        %v540 = vpop.permute.xlu0 %539
        %vm541 = vcmask 1046528
        %v542 = vrot.slane %v308, 1
        %v543 = vrot.slane %v309, 1
        %v544 = vsel %vm541, %v542, %v543
        %v545 = vrot.slane %v340, 1
        %v546 = vsel %vm541, %v543, %v545
        %v547 = vrot.slane %v310, 1
        %v548 = vrot.slane %v311, 1
        %v549 = vsel %vm541, %v547, %v548
        %v550 = vrot.slane %v341, 1
        %v551 = vsel %vm541, %v548, %v550
        %v552 = vrot.slane %v312, 1
        %v553 = vrot.slane %v313, 1
        %v554 = vsel %vm541, %v552, %v553
        %v555 = vrot.slane %v342, 1
        %v556 = vsel %vm541, %v553, %v555
        %v557 = vrot.slane %v314, 1
        %v558 = vrot.slane %v315, 1
        %v559 = vsel %vm541, %v557, %v558
        %v560 = vrot.slane %v343, 1
        %v561 = vsel %vm541, %v558, %v560
        %v562 = vrot.slane %v316, 1
        %v563 = vrot.slane %v317, 1
        %v564 = vsel %vm541, %v562, %v563
        %v565 = vrot.slane %v344, 1
        %v566 = vsel %vm541, %v563, %v565
        %v567 = vrot.slane %v318, 1
        %v568 = vrot.slane %v319, 1
        %v569 = vsel %vm541, %v567, %v568
        %v570 = vrot.slane %v345, 1
        %v571 = vsel %vm541, %v568, %v570
        %v572 = vrot.slane %v320, 1
        %v573 = vrot.slane %v321, 1
        %v574 = vsel %vm541, %v572, %v573
        %v575 = vrot.slane %v346, 1
        %v576 = vsel %vm541, %v573, %v575
        %v577 = vrot.slane %v322, 1
        %v578 = vrot.slane %v323, 1
        %v579 = vsel %vm541, %v577, %v578
        %v580 = vrot.slane %v347, 1
        %v581 = vsel %vm541, %v578, %v580
        %582 = vrot.lane.b32.xlu0 %v544, 28
        %v583 = vpop.permute.xlu0 %582
        %584 = vrot.lane.b32.xlu0 %v546, 28
        %v585 = vpop.permute.xlu0 %584
        %586 = vrot.lane.b32.xlu0 %v549, 28
        %v587 = vpop.permute.xlu0 %586
        %588 = vrot.lane.b32.xlu0 %v551, 28
        %v589 = vpop.permute.xlu0 %588
        %590 = vrot.lane.b32.xlu0 %v554, 28
        %v591 = vpop.permute.xlu0 %590
        %592 = vrot.lane.b32.xlu0 %v556, 28
        %v593 = vpop.permute.xlu0 %592
        %594 = vrot.lane.b32.xlu0 %v559, 28
        %v595 = vpop.permute.xlu0 %594
        %596 = vrot.lane.b32.xlu0 %v561, 28
        %v597 = vpop.permute.xlu0 %596
        %598 = vrot.lane.b32.xlu0 %v564, 28
        %v599 = vpop.permute.xlu0 %598
        %600 = vrot.lane.b32.xlu0 %v566, 28
        %v601 = vpop.permute.xlu0 %600
        %602 = vrot.lane.b32.xlu0 %v569, 28
        %v603 = vpop.permute.xlu0 %602
        %604 = vrot.lane.b32.xlu0 %v571, 28
        %v605 = vpop.permute.xlu0 %604
        %606 = vrot.lane.b32.xlu0 %v574, 28
        %v607 = vpop.permute.xlu0 %606
        %608 = vrot.lane.b32.xlu0 %v576, 28
        %v609 = vpop.permute.xlu0 %608
        %610 = vrot.lane.b32.xlu0 %v579, 28
        %v611 = vpop.permute.xlu0 %610
        %612 = vrot.lane.b32.xlu0 %v581, 28
        %v613 = vpop.permute.xlu0 %612
        %vm614 = vsmask.f32 6400
        %v615 = vrot.slane %v350, 1
        %v616 = vrot.slane %v352, 2
        %v617 = vor.u32 %v615, %v616
        %v618 = vrot.slane %v361, 1
        %v619 = vrot.slane %v357, 2
        %v620 = vor.u32 %v618, %v619
        %v621 = vsel %vm614, %v617, %v620
        %v622 = vshrl.u32 %v340, 16
        %v624 = vrot.slane %v622, 1
        %v625 = vrot.slane %v365, 2
        %v626 = vor.u32 %v624, %v625
        %v627 = vsel %vm614, %v620, %v626
        %v628 = vrot.slane %v370, 1
        %v629 = vrot.slane %v372, 2
        %v630 = vor.u32 %v628, %v629
        %v631 = vrot.slane %v381, 1
        %v632 = vrot.slane %v377, 2
        %v633 = vor.u32 %v631, %v632
        %v634 = vsel %vm614, %v630, %v633
        %v635 = vshrl.u32 %v341, 16
        %v637 = vrot.slane %v635, 1
        %v638 = vrot.slane %v385, 2
        %v639 = vor.u32 %v637, %v638
        %v640 = vsel %vm614, %v633, %v639
        %v641 = vrot.slane %v390, 1
        %v642 = vrot.slane %v392, 2
        %v643 = vor.u32 %v641, %v642
        %v644 = vrot.slane %v401, 1
        %v645 = vrot.slane %v397, 2
        %v646 = vor.u32 %v644, %v645
        %v647 = vsel %vm614, %v643, %v646
        %v648 = vshrl.u32 %v342, 16
        %v650 = vrot.slane %v648, 1
        %v651 = vrot.slane %v405, 2
        %v652 = vor.u32 %v650, %v651
        %v653 = vsel %vm614, %v646, %v652
        %v654 = vrot.slane %v410, 1
        %v655 = vrot.slane %v412, 2
        %v656 = vor.u32 %v654, %v655
        %v657 = vrot.slane %v421, 1
        %v658 = vrot.slane %v417, 2
        %v659 = vor.u32 %v657, %v658
        %v660 = vsel %vm614, %v656, %v659
        %v661 = vshrl.u32 %v343, 16
        %v663 = vrot.slane %v661, 1
        %v664 = vrot.slane %v425, 2
        %v665 = vor.u32 %v663, %v664
        %v666 = vsel %vm614, %v659, %v665
        %v667 = vrot.slane %v430, 1
        %v668 = vrot.slane %v432, 2
        %v669 = vor.u32 %v667, %v668
        %v670 = vrot.slane %v441, 1
        %v671 = vrot.slane %v437, 2
        %v672 = vor.u32 %v670, %v671
        %v673 = vsel %vm614, %v669, %v672
        %v674 = vshrl.u32 %v344, 16
        %v676 = vrot.slane %v674, 1
        %v677 = vrot.slane %v445, 2
        %v678 = vor.u32 %v676, %v677
        %v679 = vsel %vm614, %v672, %v678
        %v680 = vrot.slane %v450, 1
        %v681 = vrot.slane %v452, 2
        %v682 = vor.u32 %v680, %v681
        %v683 = vrot.slane %v461, 1
        %v684 = vrot.slane %v457, 2
        %v685 = vor.u32 %v683, %v684
        %v686 = vsel %vm614, %v682, %v685
        %v687 = vshrl.u32 %v345, 16
        %v689 = vrot.slane %v687, 1
        %v690 = vrot.slane %v465, 2
        %v691 = vor.u32 %v689, %v690
        %v692 = vsel %vm614, %v685, %v691
        %v693 = vrot.slane %v470, 1
        %v694 = vrot.slane %v472, 2
        %v695 = vor.u32 %v693, %v694
        %v696 = vrot.slane %v481, 1
        %v697 = vrot.slane %v477, 2
        %v698 = vor.u32 %v696, %v697
        %v699 = vsel %vm614, %v695, %v698
        %v700 = vshrl.u32 %v346, 16
        %v702 = vrot.slane %v700, 1
        %v703 = vrot.slane %v485, 2
        %v704 = vor.u32 %v702, %v703
        %v705 = vsel %vm614, %v698, %v704
        %v706 = vrot.slane %v490, 1
        %v707 = vrot.slane %v492, 2
        %v708 = vor.u32 %v706, %v707
        %v709 = vrot.slane %v501, 1
        %v710 = vrot.slane %v497, 2
        %v711 = vor.u32 %v709, %v710
        %v712 = vsel %vm614, %v708, %v711
        %v713 = vshrl.u32 %v347, 16
        %v715 = vrot.slane %v713, 1
        %v716 = vrot.slane %v505, 2
        %v717 = vor.u32 %v715, %v716
        %v718 = vsel %vm614, %v711, %v717
        %719 = vrot.lane.b32.xlu0 %v621, 42
        %v720 = vpop.permute.xlu0 %719
        %721 = vrot.lane.b32.xlu0 %v627, 42
        %v722 = vpop.permute.xlu0 %721
        %723 = vrot.lane.b32.xlu0 %v634, 42
        %v724 = vpop.permute.xlu0 %723
        %725 = vrot.lane.b32.xlu0 %v640, 42
        %v726 = vpop.permute.xlu0 %725
        %727 = vrot.lane.b32.xlu0 %v647, 42
        %v728 = vpop.permute.xlu0 %727
        %729 = vrot.lane.b32.xlu0 %v653, 42
        %v730 = vpop.permute.xlu0 %729
        %731 = vrot.lane.b32.xlu0 %v660, 42
        %v732 = vpop.permute.xlu0 %731
        %733 = vrot.lane.b32.xlu0 %v666, 42
        %v734 = vpop.permute.xlu0 %733
        %735 = vrot.lane.b32.xlu0 %v673, 42
        %v736 = vpop.permute.xlu0 %735
        %737 = vrot.lane.b32.xlu0 %v679, 42
        %v738 = vpop.permute.xlu0 %737
        %739 = vrot.lane.b32.xlu0 %v686, 42
        %v740 = vpop.permute.xlu0 %739
        %741 = vrot.lane.b32.xlu0 %v692, 42
        %v742 = vpop.permute.xlu0 %741
        %743 = vrot.lane.b32.xlu0 %v699, 42
        %v744 = vpop.permute.xlu0 %743
        %745 = vrot.lane.b32.xlu0 %v705, 42
        %v746 = vpop.permute.xlu0 %745
        %747 = vrot.lane.b32.xlu0 %v712, 42
        %v748 = vpop.permute.xlu0 %747
        %749 = vrot.lane.b32.xlu0 %v718, 42
        %v750 = vpop.permute.xlu0 %749
        %vm751 = vcmask 1045504
        %v752 = vrot.slane %v308, 2
        %v753 = vrot.slane %v309, 2
        %v754 = vsel %vm751, %v752, %v753
        %v755 = vrot.slane %v340, 2
        %v756 = vsel %vm751, %v753, %v755
        %v757 = vrot.slane %v310, 2
        %v758 = vrot.slane %v311, 2
        %v759 = vsel %vm751, %v757, %v758
        %v760 = vrot.slane %v341, 2
        %v761 = vsel %vm751, %v758, %v760
        %v762 = vrot.slane %v312, 2
        %v763 = vrot.slane %v313, 2
        %v764 = vsel %vm751, %v762, %v763
        %v765 = vrot.slane %v342, 2
        %v766 = vsel %vm751, %v763, %v765
        %v767 = vrot.slane %v314, 2
        %v768 = vrot.slane %v315, 2
        %v769 = vsel %vm751, %v767, %v768
        %v770 = vrot.slane %v343, 2
        %v771 = vsel %vm751, %v768, %v770
        %v772 = vrot.slane %v316, 2
        %v773 = vrot.slane %v317, 2
        %v774 = vsel %vm751, %v772, %v773
        %v775 = vrot.slane %v344, 2
        %v776 = vsel %vm751, %v773, %v775
        %v777 = vrot.slane %v318, 2
        %v778 = vrot.slane %v319, 2
        %v779 = vsel %vm751, %v777, %v778
        %v780 = vrot.slane %v345, 2
        %v781 = vsel %vm751, %v778, %v780
        %v782 = vrot.slane %v320, 2
        %v783 = vrot.slane %v321, 2
        %v784 = vsel %vm751, %v782, %v783
        %v785 = vrot.slane %v346, 2
        %v786 = vsel %vm751, %v783, %v785
        %v787 = vrot.slane %v322, 2
        %v788 = vrot.slane %v323, 2
        %v789 = vsel %vm751, %v787, %v788
        %v790 = vrot.slane %v347, 2
        %v791 = vsel %vm751, %v788, %v790
        %792 = vrot.lane.b32.xlu0 %v754, 56
        %v793 = vpop.permute.xlu0 %792
        %794 = vrot.lane.b32.xlu0 %v756, 56
        %v795 = vpop.permute.xlu0 %794
        %796 = vrot.lane.b32.xlu0 %v759, 56
        %v797 = vpop.permute.xlu0 %796
        %798 = vrot.lane.b32.xlu0 %v761, 56
        %v799 = vpop.permute.xlu0 %798
        %800 = vrot.lane.b32.xlu0 %v764, 56
        %v801 = vpop.permute.xlu0 %800
        %802 = vrot.lane.b32.xlu0 %v766, 56
        %v803 = vpop.permute.xlu0 %802
        %804 = vrot.lane.b32.xlu0 %v769, 56
        %v805 = vpop.permute.xlu0 %804
        %806 = vrot.lane.b32.xlu0 %v771, 56
        %v807 = vpop.permute.xlu0 %806
        %808 = vrot.lane.b32.xlu0 %v774, 56
        %v809 = vpop.permute.xlu0 %808
        %810 = vrot.lane.b32.xlu0 %v776, 56
        %v811 = vpop.permute.xlu0 %810
        %812 = vrot.lane.b32.xlu0 %v779, 56
        %v813 = vpop.permute.xlu0 %812
        %814 = vrot.lane.b32.xlu0 %v781, 56
        %v815 = vpop.permute.xlu0 %814
        %816 = vrot.lane.b32.xlu0 %v784, 56
        %v817 = vpop.permute.xlu0 %816
        %818 = vrot.lane.b32.xlu0 %v786, 56
        %v819 = vpop.permute.xlu0 %818
        %820 = vrot.lane.b32.xlu0 %v789, 56
        %v821 = vpop.permute.xlu0 %820
        %822 = vrot.lane.b32.xlu0 %v791, 56
        %v823 = vpop.permute.xlu0 %822
        %vm824 = vsmask.f32 5376
        %v825 = vrot.slane %v350, 2
        %v826 = vrot.slane %v352, 3
        %v827 = vor.u32 %v825, %v826
        %v828 = vrot.slane %v361, 2
        %v829 = vrot.slane %v357, 3
        %v830 = vor.u32 %v828, %v829
        %v831 = vsel %vm824, %v827, %v830
        %v832 = vrot.slane %v622, 2
        %v833 = vrot.slane %v365, 3
        %v834 = vor.u32 %v832, %v833
        %v835 = vsel %vm824, %v830, %v834
        %v836 = vrot.slane %v370, 2
        %v837 = vrot.slane %v372, 3
        %v838 = vor.u32 %v836, %v837
        %v839 = vrot.slane %v381, 2
        %v840 = vrot.slane %v377, 3
        %v841 = vor.u32 %v839, %v840
        %v842 = vsel %vm824, %v838, %v841
        %v843 = vrot.slane %v635, 2
        %v844 = vrot.slane %v385, 3
        %v845 = vor.u32 %v843, %v844
        %v846 = vsel %vm824, %v841, %v845
        %v847 = vrot.slane %v390, 2
        %v848 = vrot.slane %v392, 3
        %v849 = vor.u32 %v847, %v848
        %v850 = vrot.slane %v401, 2
        %v851 = vrot.slane %v397, 3
        %v852 = vor.u32 %v850, %v851
        %v853 = vsel %vm824, %v849, %v852
        %v854 = vrot.slane %v648, 2
        %v855 = vrot.slane %v405, 3
        %v856 = vor.u32 %v854, %v855
        %v857 = vsel %vm824, %v852, %v856
        %v858 = vrot.slane %v410, 2
        %v859 = vrot.slane %v412, 3
        %v860 = vor.u32 %v858, %v859
        %v861 = vrot.slane %v421, 2
        %v862 = vrot.slane %v417, 3
        %v863 = vor.u32 %v861, %v862
        %v864 = vsel %vm824, %v860, %v863
        %v865 = vrot.slane %v661, 2
        %v866 = vrot.slane %v425, 3
        %v867 = vor.u32 %v865, %v866
        %v868 = vsel %vm824, %v863, %v867
        %v869 = vrot.slane %v430, 2
        %v870 = vrot.slane %v432, 3
        %v871 = vor.u32 %v869, %v870
        %v872 = vrot.slane %v441, 2
        %v873 = vrot.slane %v437, 3
        %v874 = vor.u32 %v872, %v873
        %v875 = vsel %vm824, %v871, %v874
        %v876 = vrot.slane %v674, 2
        %v877 = vrot.slane %v445, 3
        %v878 = vor.u32 %v876, %v877
        %v879 = vsel %vm824, %v874, %v878
        %v880 = vrot.slane %v450, 2
        %v881 = vrot.slane %v452, 3
        %v882 = vor.u32 %v880, %v881
        %v883 = vrot.slane %v461, 2
        %v884 = vrot.slane %v457, 3
        %v885 = vor.u32 %v883, %v884
        %v886 = vsel %vm824, %v882, %v885
        %v887 = vrot.slane %v687, 2
        %v888 = vrot.slane %v465, 3
        %v889 = vor.u32 %v887, %v888
        %v890 = vsel %vm824, %v885, %v889
        %v891 = vrot.slane %v470, 2
        %v892 = vrot.slane %v472, 3
        %v893 = vor.u32 %v891, %v892
        %v894 = vrot.slane %v481, 2
        %v895 = vrot.slane %v477, 3
        %v896 = vor.u32 %v894, %v895
        %v897 = vsel %vm824, %v893, %v896
        %v898 = vrot.slane %v700, 2
        %v899 = vrot.slane %v485, 3
        %v900 = vor.u32 %v898, %v899
        %v901 = vsel %vm824, %v896, %v900
        %v902 = vrot.slane %v490, 2
        %v903 = vrot.slane %v492, 3
        %v904 = vor.u32 %v902, %v903
        %v905 = vrot.slane %v501, 2
        %v906 = vrot.slane %v497, 3
        %v907 = vor.u32 %v905, %v906
        %v908 = vsel %vm824, %v904, %v907
        %v909 = vrot.slane %v713, 2
        %v910 = vrot.slane %v505, 3
        %v911 = vor.u32 %v909, %v910
        %v912 = vsel %vm824, %v907, %v911
        %913 = vrot.lane.b32.xlu0 %v831, 70
        %v914 = vpop.permute.xlu0 %913
        %915 = vrot.lane.b32.xlu0 %v835, 70
        %v916 = vpop.permute.xlu0 %915
        %917 = vrot.lane.b32.xlu0 %v842, 70
        %v918 = vpop.permute.xlu0 %917
        %919 = vrot.lane.b32.xlu0 %v846, 70
        %v920 = vpop.permute.xlu0 %919
        %921 = vrot.lane.b32.xlu0 %v853, 70
        %v922 = vpop.permute.xlu0 %921
        %923 = vrot.lane.b32.xlu0 %v857, 70
        %v924 = vpop.permute.xlu0 %923
        %925 = vrot.lane.b32.xlu0 %v864, 70
        %v926 = vpop.permute.xlu0 %925
        %927 = vrot.lane.b32.xlu0 %v868, 70
        %v928 = vpop.permute.xlu0 %927
        %929 = vrot.lane.b32.xlu0 %v875, 70
        %v930 = vpop.permute.xlu0 %929
        %931 = vrot.lane.b32.xlu0 %v879, 70
        %v932 = vpop.permute.xlu0 %931
        %933 = vrot.lane.b32.xlu0 %v886, 70
        %v934 = vpop.permute.xlu0 %933
        %935 = vrot.lane.b32.xlu0 %v890, 70
        %v936 = vpop.permute.xlu0 %935
        %937 = vrot.lane.b32.xlu0 %v897, 70
        %v938 = vpop.permute.xlu0 %937
        %939 = vrot.lane.b32.xlu0 %v901, 70
        %v940 = vpop.permute.xlu0 %939
        %941 = vrot.lane.b32.xlu0 %v908, 70
        %v942 = vpop.permute.xlu0 %941
        %943 = vrot.lane.b32.xlu0 %v912, 70
        %v944 = vpop.permute.xlu0 %943
        %vm945 = vcmask 1044480
        %v946 = vrot.slane %v308, 3
        %v947 = vrot.slane %v309, 3
        %v948 = vsel %vm945, %v946, %v947
        %v949 = vrot.slane %v340, 3
        %v950 = vsel %vm945, %v947, %v949
        %v951 = vrot.slane %v310, 3
        %v952 = vrot.slane %v311, 3
        %v953 = vsel %vm945, %v951, %v952
        %v954 = vrot.slane %v341, 3
        %v955 = vsel %vm945, %v952, %v954
        %v956 = vrot.slane %v312, 3
        %v957 = vrot.slane %v313, 3
        %v958 = vsel %vm945, %v956, %v957
        %v959 = vrot.slane %v342, 3
        %v960 = vsel %vm945, %v957, %v959
        %v961 = vrot.slane %v314, 3
        %v962 = vrot.slane %v315, 3
        %v963 = vsel %vm945, %v961, %v962
        %v964 = vrot.slane %v343, 3
        %v965 = vsel %vm945, %v962, %v964
        %v966 = vrot.slane %v316, 3
        %v967 = vrot.slane %v317, 3
        %v968 = vsel %vm945, %v966, %v967
        %v969 = vrot.slane %v344, 3
        %v970 = vsel %vm945, %v967, %v969
        %v971 = vrot.slane %v318, 3
        %v972 = vrot.slane %v319, 3
        %v973 = vsel %vm945, %v971, %v972
        %v974 = vrot.slane %v345, 3
        %v975 = vsel %vm945, %v972, %v974
        %v976 = vrot.slane %v320, 3
        %v977 = vrot.slane %v321, 3
        %v978 = vsel %vm945, %v976, %v977
        %v979 = vrot.slane %v346, 3
        %v980 = vsel %vm945, %v977, %v979
        %v981 = vrot.slane %v322, 3
        %v982 = vrot.slane %v323, 3
        %v983 = vsel %vm945, %v981, %v982
        %v984 = vrot.slane %v347, 3
        %v985 = vsel %vm945, %v982, %v984
        %986 = vrot.lane.b32.xlu0 %v948, 84
        %v987 = vpop.permute.xlu0 %986
        %988 = vrot.lane.b32.xlu0 %v950, 84
        %v989 = vpop.permute.xlu0 %988
        %990 = vrot.lane.b32.xlu0 %v953, 84
        %v991 = vpop.permute.xlu0 %990
        %992 = vrot.lane.b32.xlu0 %v955, 84
        %v993 = vpop.permute.xlu0 %992
        %994 = vrot.lane.b32.xlu0 %v958, 84
        %v995 = vpop.permute.xlu0 %994
        %996 = vrot.lane.b32.xlu0 %v960, 84
        %v997 = vpop.permute.xlu0 %996
        %998 = vrot.lane.b32.xlu0 %v963, 84
        %v999 = vpop.permute.xlu0 %998
        %1000 = vrot.lane.b32.xlu0 %v965, 84
        %v1001 = vpop.permute.xlu0 %1000
        %1002 = vrot.lane.b32.xlu0 %v968, 84
        %v1003 = vpop.permute.xlu0 %1002
        %1004 = vrot.lane.b32.xlu0 %v970, 84
        %v1005 = vpop.permute.xlu0 %1004
        %1006 = vrot.lane.b32.xlu0 %v973, 84
        %v1007 = vpop.permute.xlu0 %1006
        %1008 = vrot.lane.b32.xlu0 %v975, 84
        %v1009 = vpop.permute.xlu0 %1008
        %1010 = vrot.lane.b32.xlu0 %v978, 84
        %v1011 = vpop.permute.xlu0 %1010
        %1012 = vrot.lane.b32.xlu0 %v980, 84
        %v1013 = vpop.permute.xlu0 %1012
        %1014 = vrot.lane.b32.xlu0 %v983, 84
        %v1015 = vpop.permute.xlu0 %1014
        %1016 = vrot.lane.b32.xlu0 %v985, 84
        %v1017 = vpop.permute.xlu0 %1016
        %vm1018 = vcmask 113664
        %v1020 = vsel %vm1018, %v308, %v510
        %v1022 = vsel %vm1018, %v309, %v512
        %v1024 = vsel %vm1018, %v310, %v514
        %v1026 = vsel %vm1018, %v311, %v516
        %v1028 = vsel %vm1018, %v312, %v518
        %v1030 = vsel %vm1018, %v313, %v520
        %v1032 = vsel %vm1018, %v314, %v522
        %v1034 = vsel %vm1018, %v315, %v524
        %v1036 = vsel %vm1018, %v316, %v526
        %v1038 = vsel %vm1018, %v317, %v528
        %v1040 = vsel %vm1018, %v318, %v530
        %v1042 = vsel %vm1018, %v319, %v532
        %v1044 = vsel %vm1018, %v320, %v534
        %v1046 = vsel %vm1018, %v321, %v536
        %v1048 = vsel %vm1018, %v322, %v538
        %v1050 = vsel %vm1018, %v323, %v540
        %vm1051 = vcmask 228352
        %v1053 = vsel %vm1051, %v1020, %v583
        %v1055 = vsel %vm1051, %v1022, %v585
        %v1057 = vsel %vm1051, %v1024, %v587
        %v1059 = vsel %vm1051, %v1026, %v589
        %v1061 = vsel %vm1051, %v1028, %v591
        %v1063 = vsel %vm1051, %v1030, %v593
        %v1065 = vsel %vm1051, %v1032, %v595
        %v1067 = vsel %vm1051, %v1034, %v597
        %v1069 = vsel %vm1051, %v1036, %v599
        %v1071 = vsel %vm1051, %v1038, %v601
        %v1073 = vsel %vm1051, %v1040, %v603
        %v1075 = vsel %vm1051, %v1042, %v605
        %v1077 = vsel %vm1051, %v1044, %v607
        %v1079 = vsel %vm1051, %v1046, %v609
        %v1081 = vsel %vm1051, %v1048, %v611
        %v1083 = vsel %vm1051, %v1050, %v613
        %vm1084 = vcmask 343040
        %v1086 = vsel %vm1084, %v1053, %v720
        %v1088 = vsel %vm1084, %v1055, %v722
        %v1090 = vsel %vm1084, %v1057, %v724
        %v1092 = vsel %vm1084, %v1059, %v726
        %v1094 = vsel %vm1084, %v1061, %v728
        %v1096 = vsel %vm1084, %v1063, %v730
        %v1098 = vsel %vm1084, %v1065, %v732
        %v1100 = vsel %vm1084, %v1067, %v734
        %v1102 = vsel %vm1084, %v1069, %v736
        %v1104 = vsel %vm1084, %v1071, %v738
        %v1106 = vsel %vm1084, %v1073, %v740
        %v1108 = vsel %vm1084, %v1075, %v742
        %v1110 = vsel %vm1084, %v1077, %v744
        %v1112 = vsel %vm1084, %v1079, %v746
        %v1114 = vsel %vm1084, %v1081, %v748
        %v1116 = vsel %vm1084, %v1083, %v750
        %vm1117 = vcmask 457728
        %v1119 = vsel %vm1117, %v1086, %v793
        %v1121 = vsel %vm1117, %v1088, %v795
        %v1123 = vsel %vm1117, %v1090, %v797
        %v1125 = vsel %vm1117, %v1092, %v799
        %v1127 = vsel %vm1117, %v1094, %v801
        %v1129 = vsel %vm1117, %v1096, %v803
        %v1131 = vsel %vm1117, %v1098, %v805
        %v1133 = vsel %vm1117, %v1100, %v807
        %v1135 = vsel %vm1117, %v1102, %v809
        %v1137 = vsel %vm1117, %v1104, %v811
        %v1139 = vsel %vm1117, %v1106, %v813
        %v1141 = vsel %vm1117, %v1108, %v815
        %v1143 = vsel %vm1117, %v1110, %v817
        %v1145 = vsel %vm1117, %v1112, %v819
        %v1147 = vsel %vm1117, %v1114, %v821
        %v1149 = vsel %vm1117, %v1116, %v823
        %vm1150 = vcmask 572416
        %v1152 = vsel %vm1150, %v1119, %v914
        %v1154 = vsel %vm1150, %v1121, %v916
        %v1156 = vsel %vm1150, %v1123, %v918
        %v1158 = vsel %vm1150, %v1125, %v920
        %v1160 = vsel %vm1150, %v1127, %v922
        %v1162 = vsel %vm1150, %v1129, %v924
        %v1164 = vsel %vm1150, %v1131, %v926
        %v1166 = vsel %vm1150, %v1133, %v928
        %v1168 = vsel %vm1150, %v1135, %v930
        %v1170 = vsel %vm1150, %v1137, %v932
        %v1172 = vsel %vm1150, %v1139, %v934
        %v1174 = vsel %vm1150, %v1141, %v936
        %v1176 = vsel %vm1150, %v1143, %v938
        %v1178 = vsel %vm1150, %v1145, %v940
        %v1180 = vsel %vm1150, %v1147, %v942
        %v1182 = vsel %vm1150, %v1149, %v944
        %vm1183 = vcmask 687104
        %v1185 = vsel %vm1183, %v1152, %v987
        %v1187 = vsel %vm1183, %v1154, %v989
        %v1189 = vsel %vm1183, %v1156, %v991
        %v1191 = vsel %vm1183, %v1158, %v993
        %v1193 = vsel %vm1183, %v1160, %v995
        %v1195 = vsel %vm1183, %v1162, %v997
        %v1197 = vsel %vm1183, %v1164, %v999
        %v1199 = vsel %vm1183, %v1166, %v1001
        %v1201 = vsel %vm1183, %v1168, %v1003
        %v1203 = vsel %vm1183, %v1170, %v1005
        %v1205 = vsel %vm1183, %v1172, %v1007
        %v1207 = vsel %vm1183, %v1174, %v1009
        %v1209 = vsel %vm1183, %v1176, %v1011
        %v1211 = vsel %vm1183, %v1178, %v1013
        %v1213 = vsel %vm1183, %v1180, %v1015
        %v1215 = vsel %vm1183, %v1182, %v1017
        %v1216 = vld [vmem:[%s1] sm:$0xf]
        %v1217 = vld [vmem:[%s1 + $0x4] sm:$0xf]
        %v1218 = vld [vmem:[%s1 + $0x8] sm:$0xf]
        %v1219 = vld [vmem:[%s1 + $0xc] sm:$0xf]
        %v1220 = vld [vmem:[%s1 + $0x10] sm:$0xf]
        %v1221 = vld [vmem:[%s1 + $0x14] sm:$0xf]
        %v1222 = vld [vmem:[%s1 + $0x18] sm:$0xf]
        %v1223 = vld [vmem:[%s1 + $0x1c] sm:$0xf]
        %v1224 = vld [vmem:[%s1 + $0x20] sm:$0xf]
        %v1225 = vld [vmem:[%s1 + $0x24] sm:$0xf]
        %v1226 = vld [vmem:[%s1 + $0x28] sm:$0xf]
        %v1227 = vld [vmem:[%s1 + $0x2c] sm:$0xf]
        %v1228 = vld [vmem:[%s1 + $0x30] sm:$0x1]
        %v1229 = vld [vmem:[%s2] sm:$0x1]
        %v1231 = vlaneseq
        %v1232 = vshrl.u32 %v1231, 7
        %v1233 = vsub.s32 0, %v1232
        %v1234 = vrot.slane %v1229, %v1233
        %v1249 = vunpack.c.l.b16 %v1216
        %v1250 = vunpack.c.l.b16 %v1217
        %v1251 = vunpack.c.l.b16 %v1218
        %v1252 = vunpack.c.l.b16 %v1219
        %v1253 = vunpack.c.l.b16 %v1220
        %v1254 = vunpack.c.l.b16 %v1221
        %v1255 = vunpack.c.l.b16 %v1222
        %v1256 = vunpack.c.l.b16 %v1223
        %v1257 = vunpack.c.l.b16 %v1224
        %v1258 = vunpack.c.l.b16 %v1225
        %v1259 = vunpack.c.l.b16 %v1226
        %v1260 = vunpack.c.l.b16 %v1227
        %v1261 = vunpack.c.l.b16 %v1228
        %v1262 = vpack.c.b16 %v1250, %v1249
        %v1263 = vpack.c.b16 %v1252, %v1251
        %v1264 = vpack.c.b16 %v1254, %v1253
        %v1265 = vpack.c.b16 %v1256, %v1255
        %v1266 = vpack.c.b16 %v1258, %v1257
        %v1267 = vpack.c.b16 %v1260, %v1259
        %v1268 = vpack.c.b16 %v1261, %v1261
        %vm1275 = vcmask 801792
        %v1276 = vsel %vm1275, %v1185, 0
        %v1278 = vsel %vm1275, %v1187, 0
        %v1280 = vsel %vm1275, %v1189, 0
        %v1282 = vsel %vm1275, %v1191, 0
        %v1284 = vsel %vm1275, %v1193, 0
        %v1286 = vsel %vm1275, %v1195, 0
        %v1288 = vsel %vm1275, %v1197, 0
        %v1290 = vsel %vm1275, %v1199, 0
        %v1292 = vsel %vm1275, %v1201, 0
        %v1294 = vsel %vm1275, %v1203, 0
        %v1296 = vsel %vm1275, %v1205, 0
        %v1298 = vsel %vm1275, %v1207, 0
        %v1300 = vsel %vm1275, %v1209, 0
        %v1302 = vsel %vm1275, %v1211, 0
        %v1304 = vsel %vm1275, %v1213, 0
        %v1306 = vsel %vm1275, %v1215, 0
        %vm1308 = vcmask 1040384
        %v1310 = vsel %vm1308, %v1268, 0
        %1312 = vmatprep.subr.bf16.mxu0 0
        %1313 = vmatpush1.bf16.msra.mxu0 0
        %1314 = vmatprep.subr.bf16.mxu0 0
        %1315 = vmatpush1.bf16.msra.mxu0 %v1310
        %1316 = vmatprep.subr.bf16.mxu0 0
        %1317 = vmatpush1.bf16.msra.mxu0 %v1267
        %1318 = vmatprep.subr.bf16.mxu0 0
        %1319 = vmatpush1.bf16.msra.mxu0 %v1266
        %1320 = vmatprep.subr.bf16.mxu0 0
        %1321 = vmatpush1.bf16.msra.mxu0 %v1265
        %1322 = vmatprep.subr.bf16.mxu0 0
        %1323 = vmatpush1.bf16.msra.mxu0 %v1264
        %1324 = vmatprep.subr.bf16.mxu0 0
        %1325 = vmatpush1.bf16.msra.mxu0 %v1263
        %1326 = vmatprep.subr.bf16.mxu0 0
        %1327 = vmatpush1.bf16.msra.mxu0 %v1262
        %1328 = vmatprep.subr.bf16.mxu0 0
        %1329 = vmatpush2.bf16.msra.mxu0 0
        %1330 = vmatprep.subr.bf16.mxu0 0
        %1331 = vmatpush2.bf16.msra.mxu0 0
        %1332 = vmatprep.subr.bf16.mxu0 0
        %1333 = vmatpush2.bf16.msra.mxu0 0
        %1334 = vmatprep.subr.bf16.mxu0 0
        %1335 = vmatpush2.bf16.msra.mxu0 0
        %1336 = vmatprep.subr.bf16.mxu0 0
        %1337 = vmatpush2.bf16.msra.mxu0 0
        %1338 = vmatprep.subr.bf16.mxu0 0
        %1339 = vmatpush2.bf16.msra.mxu0 0
        %1340 = vmatprep.subr.bf16.mxu0 0
        %1341 = vmatpush2.bf16.msra.mxu0 0
        %1342 = vmatprep.subr.bf16.mxu0 0
        %1343 = vmatpush2.bf16.msra.mxu0 0
        %1344 = vmatprep.mubr.bf16.mxu0 0
        %1345 = vmatmul.mubr.bf16.gmra.mxu0 %v1276
        %v1346 = vpop.f32.mrf.mxu0
        %v1347 = vadd.f32 %v1234, %v1346
        %v1348 = vpop.f32.mrf.mxu0
        %v1349 = vpop.f32.mrf.mxu0
        %v1350 = vadd.f32 %v1234, %v1349
        %v1351 = vpop.f32.mrf.mxu0
        %1352 = vmatprep.mubr.bf16.mxu0 0
        %1353 = vmatmul.mubr.bf16.gmra.mxu0 %v1278
        %v1354 = vpop.f32.mrf.mxu0
        %v1355 = vadd.f32 %v1234, %v1354
        %v1356 = vpop.f32.mrf.mxu0
        %v1357 = vpop.f32.mrf.mxu0
        %v1358 = vadd.f32 %v1234, %v1357
        %v1359 = vpop.f32.mrf.mxu0
        %1360 = vmatprep.mubr.bf16.mxu0 0
        %1361 = vmatmul.mubr.bf16.gmra.mxu0 %v1280
        %v1362 = vpop.f32.mrf.mxu0
        %v1363 = vadd.f32 %v1234, %v1362
        %v1364 = vpop.f32.mrf.mxu0
        %v1365 = vpop.f32.mrf.mxu0
        %v1366 = vadd.f32 %v1234, %v1365
        %v1367 = vpop.f32.mrf.mxu0
        %1368 = vmatprep.mubr.bf16.mxu0 0
        %1369 = vmatmul.mubr.bf16.gmra.mxu0 %v1282
        %v1370 = vpop.f32.mrf.mxu0
        %v1371 = vadd.f32 %v1234, %v1370
        %v1372 = vpop.f32.mrf.mxu0
        %v1373 = vpop.f32.mrf.mxu0
        %v1374 = vadd.f32 %v1234, %v1373
        %v1375 = vpop.f32.mrf.mxu0
        %1376 = vmatprep.mubr.bf16.mxu0 0
        %1377 = vmatmul.mubr.bf16.gmra.mxu0 %v1284
        %v1378 = vpop.f32.mrf.mxu0
        %v1379 = vadd.f32 %v1234, %v1378
        %v1380 = vpop.f32.mrf.mxu0
        %v1381 = vpop.f32.mrf.mxu0
        %v1382 = vadd.f32 %v1234, %v1381
        %v1383 = vpop.f32.mrf.mxu0
        %1384 = vmatprep.mubr.bf16.mxu0 0
        %1385 = vmatmul.mubr.bf16.gmra.mxu0 %v1286
        %v1386 = vpop.f32.mrf.mxu0
        %v1387 = vadd.f32 %v1234, %v1386
        %v1388 = vpop.f32.mrf.mxu0
        %v1389 = vpop.f32.mrf.mxu0
        %v1390 = vadd.f32 %v1234, %v1389
        %v1391 = vpop.f32.mrf.mxu0
        %1392 = vmatprep.mubr.bf16.mxu0 0
        %1393 = vmatmul.mubr.bf16.gmra.mxu0 %v1288
        %v1394 = vpop.f32.mrf.mxu0
        %v1395 = vadd.f32 %v1234, %v1394
        %v1396 = vpop.f32.mrf.mxu0
        %v1397 = vpop.f32.mrf.mxu0
        %v1398 = vadd.f32 %v1234, %v1397
        %v1399 = vpop.f32.mrf.mxu0
        %1400 = vmatprep.mubr.bf16.mxu0 0
        %1401 = vmatmul.mubr.bf16.gmra.mxu0 %v1290
        %v1402 = vpop.f32.mrf.mxu0
        %v1403 = vadd.f32 %v1234, %v1402
        %v1404 = vpop.f32.mrf.mxu0
        %v1405 = vpop.f32.mrf.mxu0
        %v1406 = vadd.f32 %v1234, %v1405
        %v1407 = vpop.f32.mrf.mxu0
        %1408 = vmatprep.mubr.bf16.mxu0 0
        %1409 = vmatmul.mubr.bf16.gmra.mxu0 %v1292
        %v1410 = vpop.f32.mrf.mxu0
        %v1411 = vadd.f32 %v1234, %v1410
        %v1412 = vpop.f32.mrf.mxu0
        %v1413 = vpop.f32.mrf.mxu0
        %v1414 = vadd.f32 %v1234, %v1413
        %v1415 = vpop.f32.mrf.mxu0
        %1416 = vmatprep.mubr.bf16.mxu0 0
        %1417 = vmatmul.mubr.bf16.gmra.mxu0 %v1294
        %v1418 = vpop.f32.mrf.mxu0
        %v1419 = vadd.f32 %v1234, %v1418
        %v1420 = vpop.f32.mrf.mxu0
        %v1421 = vpop.f32.mrf.mxu0
        %v1422 = vadd.f32 %v1234, %v1421
        %v1423 = vpop.f32.mrf.mxu0
        %1424 = vmatprep.mubr.bf16.mxu0 0
        %1425 = vmatmul.mubr.bf16.gmra.mxu0 %v1296
        %v1426 = vpop.f32.mrf.mxu0
        %v1427 = vadd.f32 %v1234, %v1426
        %v1428 = vpop.f32.mrf.mxu0
        %v1429 = vpop.f32.mrf.mxu0
        %v1430 = vadd.f32 %v1234, %v1429
        %v1431 = vpop.f32.mrf.mxu0
        %1432 = vmatprep.mubr.bf16.mxu0 0
        %1433 = vmatmul.mubr.bf16.gmra.mxu0 %v1298
        %v1434 = vpop.f32.mrf.mxu0
        %v1435 = vadd.f32 %v1234, %v1434
        %v1436 = vpop.f32.mrf.mxu0
        %v1437 = vpop.f32.mrf.mxu0
        %v1438 = vadd.f32 %v1234, %v1437
        %v1439 = vpop.f32.mrf.mxu0
        %1440 = vmatprep.mubr.bf16.mxu0 0
        %1441 = vmatmul.mubr.bf16.gmra.mxu0 %v1300
        %v1442 = vpop.f32.mrf.mxu0
        %v1443 = vadd.f32 %v1234, %v1442
        %v1444 = vpop.f32.mrf.mxu0
        %v1445 = vpop.f32.mrf.mxu0
        %v1446 = vadd.f32 %v1234, %v1445
        %v1447 = vpop.f32.mrf.mxu0
        %1448 = vmatprep.mubr.bf16.mxu0 0
        %1449 = vmatmul.mubr.bf16.gmra.mxu0 %v1302
        %v1450 = vpop.f32.mrf.mxu0
        %v1451 = vadd.f32 %v1234, %v1450
        %v1452 = vpop.f32.mrf.mxu0
        %v1453 = vpop.f32.mrf.mxu0
        %v1454 = vadd.f32 %v1234, %v1453
        %v1455 = vpop.f32.mrf.mxu0
        %1456 = vmatprep.mubr.bf16.mxu0 0
        %1457 = vmatmul.mubr.bf16.gmra.mxu0 %v1304
        %v1458 = vpop.f32.mrf.mxu0
        %v1459 = vadd.f32 %v1234, %v1458
        %v1460 = vpop.f32.mrf.mxu0
        %v1461 = vpop.f32.mrf.mxu0
        %v1462 = vadd.f32 %v1234, %v1461
        %v1463 = vpop.f32.mrf.mxu0
        %1464 = vmatprep.mubr.bf16.mxu0 0
        %1465 = vmatmul.mubr.bf16.gmra.mxu0 %v1306
        %v1466 = vpop.f32.mrf.mxu0
        %v1467 = vadd.f32 %v1234, %v1466
        %v1468 = vpop.f32.mrf.mxu0
        %v1469 = vpop.f32.mrf.mxu0
        %v1470 = vadd.f32 %v1234, %v1469
        %v1471 = vpop.f32.mrf.mxu0
        %1472 = vdwg.mxu0
        %v1473 = vmax.f32 %v1347, 0.0
        %v1474 = vmax.f32 %v1350, 0.0
        %v1475 = vmax.f32 %v1355, 0.0
        %v1476 = vmax.f32 %v1358, 0.0
        %v1477 = vmax.f32 %v1363, 0.0
        %v1478 = vmax.f32 %v1366, 0.0
        %v1479 = vmax.f32 %v1371, 0.0
        %v1480 = vmax.f32 %v1374, 0.0
        %v1481 = vmax.f32 %v1379, 0.0
        %v1482 = vmax.f32 %v1382, 0.0
        %v1483 = vmax.f32 %v1387, 0.0
        %v1484 = vmax.f32 %v1390, 0.0
        %v1485 = vmax.f32 %v1395, 0.0
        %v1486 = vmax.f32 %v1398, 0.0
        %v1487 = vmax.f32 %v1403, 0.0
        %v1488 = vmax.f32 %v1406, 0.0
        %v1489 = vmax.f32 %v1411, 0.0
        %v1490 = vmax.f32 %v1414, 0.0
        %v1491 = vmax.f32 %v1419, 0.0
        %v1492 = vmax.f32 %v1422, 0.0
        %v1493 = vmax.f32 %v1427, 0.0
        %v1494 = vmax.f32 %v1430, 0.0
        %v1495 = vmax.f32 %v1435, 0.0
        %v1496 = vmax.f32 %v1438, 0.0
        %v1497 = vmax.f32 %v1443, 0.0
        %v1498 = vmax.f32 %v1446, 0.0
        %v1499 = vmax.f32 %v1451, 0.0
        %v1500 = vmax.f32 %v1454, 0.0
        %v1501 = vmax.f32 %v1459, 0.0
        %v1502 = vmax.f32 %v1462, 0.0
        %v1503 = vmax.f32 %v1467, 0.0
        %v1504 = vmax.f32 %v1470, 0.0
        %1505 = vst [vmem:[%s190] sm:$0xff] %v1473
        %1506 = vst [vmem:[%s190 + $0x8] sm:$0xff] %v1474
        %1507 = vst [vmem:[%s190 + $0x10] sm:$0xff] %v1475
        %1508 = vst [vmem:[%s190 + $0x18] sm:$0xff] %v1476
        %1509 = vst [vmem:[%s190 + $0x20] sm:$0xff] %v1477
        %1510 = vst [vmem:[%s190 + $0x28] sm:$0xff] %v1478
        %1511 = vst [vmem:[%s190 + $0x30] sm:$0xff] %v1479
        %1512 = vst [vmem:[%s190 + $0x38] sm:$0xff] %v1480
        %1513 = vst [vmem:[%s190 + $0x40] sm:$0xff] %v1481
        %1514 = vst [vmem:[%s190 + $0x48] sm:$0xff] %v1482
        %1515 = vst [vmem:[%s190 + $0x50] sm:$0xff] %v1483
        %1516 = vst [vmem:[%s190 + $0x58] sm:$0xff] %v1484
        %1517 = vst [vmem:[%s190 + $0x60] sm:$0xff] %v1485
        %1518 = vst [vmem:[%s190 + $0x68] sm:$0xff] %v1486
        %1519 = vst [vmem:[%s190 + $0x70] sm:$0xff] %v1487
        %1520 = vst [vmem:[%s190 + $0x78] sm:$0xff] %v1488
        %1521 = vst [vmem:[%s190 + $0x80] sm:$0xff] %v1489
        %1522 = vst [vmem:[%s190 + $0x88] sm:$0xff] %v1490
        %1523 = vst [vmem:[%s190 + $0x90] sm:$0xff] %v1491
        %1524 = vst [vmem:[%s190 + $0x98] sm:$0xff] %v1492
        %1525 = vst [vmem:[%s190 + $0xa0] sm:$0xff] %v1493
        %1526 = vst [vmem:[%s190 + $0xa8] sm:$0xff] %v1494
        %1527 = vst [vmem:[%s190 + $0xb0] sm:$0xff] %v1495
        %1528 = vst [vmem:[%s190 + $0xb8] sm:$0xff] %v1496
        %1529 = vst [vmem:[%s190 + $0xc0] sm:$0xff] %v1497
        %1530 = vst [vmem:[%s190 + $0xc8] sm:$0xff] %v1498
        %1531 = vst [vmem:[%s190 + $0xd0] sm:$0xff] %v1499
        %1532 = vst [vmem:[%s190 + $0xd8] sm:$0xff] %v1500
        %1533 = vst [vmem:[%s190 + $0xe0] sm:$0xff] %v1501
        %1534 = vst [vmem:[%s190 + $0xe8] sm:$0xff] %v1502
        %1535 = vst [vmem:[%s190 + $0xf0] sm:$0xff] %v1503
        %1536 = vst [vmem:[%s190 + $0xf8] sm:$0xff] %v1504
        %s1537 = sand.u32 %s109, 1
        %s1538 = scalar_lea.sflag [#allocation3], %s1537
        %s1539 = sand.u32 %s109, 1
        %s1540 = smul.addr %s1539, 256
        %s1541 = scalar_lea.vmem [#allocation2], %s1540
        // Predicated region
        $region33: #{tpu_custom_call.1} parent=31 // pred_check
          %p1542 = pneg %p119
        $region34: #{tpu_custom_call.1} parent=31 // pred_check_branch
          %1544 = sbr.rel (%p1542) target = $region36
        $region35: #{tpu_custom_call.1} parent=31 // pred_region
          %s1545 = smul.u32 32, %s22
          %s1547 = ssub.s32 4096, 4096
          %1548 = vsyncadd %s1538, %s1547
          %s1549 = smul.addr %s21, 128
          %s1550 = sadd.s32 %s1545, %s1549
          %s1551 = smul.addr %s1550, 128
          %s1552 = scalar_lea.hbm %s3, %s1551
          %s1553 = sshll.u32 %s1541, 4
          %s1554 = int_to_ptr.vmem [resolvable:$true] %s1553
          %1559 = dma.vmem_to_hbm [thread:$0]  %s1554, 4096, %s1552, %s1538, 128, 128, 8
        $region36: #{tpu_custom_call.1} parent=31 // pred_fallthru
          _
      $region32: #{tpu_custom_call.1} parent=5 // pred_fallthru
        _
      %p1560 = scmp.le.s32.totalorder 2, %s12
      // Predicated region
      $region37: #{tpu_custom_call.1} parent=5 // pred_check
        %p1561 = pneg %p1560
      $region38: #{tpu_custom_call.1} parent=5 // pred_check_branch
        %1563 = sbr.rel (%p1561) target = $region40
      $region39: #{tpu_custom_call.1} parent=5 // pred_region
        %s1564 = ssub.s32 %s12, 2
        // Predicated region
        $region41: #{tpu_custom_call.1} parent=39 // pred_check
          %p1565 = pneg %p125
        $region42: #{tpu_custom_call.1} parent=39 // pred_check_branch
          %1567 = sbr.rel (%p1565) target = $region44
        $region43: #{tpu_custom_call.1} parent=39 // pred_region
          %s1568 = sand.u32 %s110, 1
          %s1569 = scalar_lea.sflag [#allocation3], %s1568
          %s1570 = sand.u32 %s110, 1
          %s1571 = smul.addr %s1570, 256
          %s1572 = scalar_lea.vmem [#allocation2], %s1571
          %1573 = dma.done %s1569, 4096
        $region44: #{tpu_custom_call.1} parent=39 // pred_fallthru
          _
      $region40: #{tpu_custom_call.1} parent=5 // pred_fallthru
        _
    $region6: #{tpu_custom_call.1} parent=1 // loop_footer
      %s16 = sadd.s32 1, %s12
    $region7: #{tpu_custom_call.1} parent=1 // loop_footer_branch
      %11 = sbr.rel target = $region3
    $region8: #{tpu_custom_call.1} parent=1 // loop_exit
      _
    %1574 = vsyncpa [#allocation3], 1
    %s1575 = scalar_lea.sflag [#allocation3], 1
    %1576 = vsyncpa %s1575, 1

</llo_original>
